<compile_context>
chip_gen: v6e
topology: v6e:2x2x1
jax: 0.10.0
libtpu: 0.0.40
codegen_flags: <defaults>
</compile_context>

<pallas_src>
import functools

import jax
import jax.numpy as jnp
from jax.experimental import pallas as pl
from jax.experimental.pallas import tpu as pltpu

_LANES = 128          # gather slice width: one f32 sublane row = 512 B contiguous DMA
_EPS_DEFAULT = 1e-24


# ---------------------------------------------------------------------------
# Path 1: streaming kernel — x streamed through VMEM in its native dtype.
# Grid: (batch tiles "parallel", class tiles "arbitrary"/innermost).
# ---------------------------------------------------------------------------
def _ce_stream_kernel(x_ref, y_ref, o_ref, picked_acc, *, tile_c, eps):
    j = pl.program_id(1)            # class-tile index (reduction axis, innermost)
    nj = pl.num_programs(1)

    @pl.when(j == 0)
    def _():
        picked_acc[...] = jnp.zeros_like(picked_acc)

    # Native-dtype select (bf16 stays bf16): at most one element per row
    # survives the select, so the row-sum is exact; only the picked (tile_n,1)
    # column is cast to f32.
    x = x_ref[...]                                        # (tile_n, tile_c)
    # Fold the class-tile offset into y (one (tile_n,1) op) instead of adding
    # j*tile_c to the full (tile_n, tile_c) iota.
    y_local = y_ref[...] - j * tile_c                     # (tile_n, 1) int32
    col_ids = jax.lax.broadcasted_iota(jnp.int32, x.shape, 1)
    # Padded columns of a partial trailing class tile never match a valid
    # target; TPU vselect does not propagate garbage from the unselected lane.
    picked = jnp.sum(
        jnp.where(col_ids == y_local, x, jnp.zeros_like(x)),
        axis=1, keepdims=True,
    ).astype(jnp.float32)
    picked_acc[...] += picked

    @pl.when(j == nj - 1)
    def _():
        # Per-row NLL. Rows of a partial trailing batch tile are discarded by
        # the masked partial output-block store, so no explicit row mask.
        o_ref[...] = -jnp.log(picked_acc[...] + jnp.float32(eps))


def _pick_stream_tiles(n, c, itemsize, block_bytes):
    """Prefer full rows (contiguous HBM DMA, collapses the class grid axis);
    grow tile_c before tile_n when a full row does not fit the buffer budget."""
    if c * itemsize * 8 <= block_bytes:
        tile_c = c
    else:
        tile_c = min(c, max(_LANES,
                            ((block_bytes // (8 * itemsize)) // _LANES) * _LANES))
    tile_n = max(1, block_bytes // (tile_c * itemsize))
    if tile_n >= n:
        tile_n = n
    else:
        tile_n = max(8, (tile_n // 8) * 8)
    return tile_n, tile_c


def _ce_stream(x, y_col, eps, block_bytes, tile_n, tile_c):
    n, c = x.shape
    if tile_n is None or tile_c is None:
        tile_n, tile_c = _pick_stream_tiles(n, c, x.dtype.itemsize, block_bytes)
    tile_n = min(tile_n, n)
    tile_c = min(tile_c, c)

    grid = (pl.cdiv(n, tile_n), pl.cdiv(c, tile_c))
    kernel = functools.partial(_ce_stream_kernel, tile_c=tile_c, eps=eps)

    return pl.pallas_call(
        kernel,
        out_shape=jax.ShapeDtypeStruct((n, 1), jnp.float32),
        grid=grid,
        in_specs=[
            pl.BlockSpec((tile_n, tile_c), lambda i, j: (i, j)),   # x tile
            pl.BlockSpec((tile_n, 1), lambda i, j: (i, 0)),        # targets
        ],
        out_specs=pl.BlockSpec((tile_n, 1), lambda i, j: (i, 0)),  # per-row NLL
        scratch_shapes=[pltpu.VMEM((tile_n, 1), jnp.float32)],
        compiler_params=pltpu.CompilerParams(
            # Batch axis parallel (per-row outputs -> v7x megacore can split it);
            # class axis is the revisited-output reduction -> arbitrary, innermost.
            dimension_semantics=("parallel", "arbitrary"),
            # ~8 MiB per x buffer, double-buffered, fits every generation's
            # scoped VMEM (v7x: 64 MiB physical / 32 MiB scoped default).
            vmem_limit_bytes=32 * 1024 * 1024,
        ),
        cost_estimate=pl.CostEstimate(
            flops=int(3 * n * c),
            transcendentals=int(n),
            bytes_accessed=int(n * c * x.dtype.itemsize + 8 * n),
        ),
    )(x, y_col)


# ---------------------------------------------------------------------------
# Path 2: gather kernel for vocab-scale C — x stays in HBM; one 128-lane DMA
# per row brings only the aligned slice containing x[i, y[i]] into VMEM.
# ---------------------------------------------------------------------------
def _ce_gather_kernel(y_smem, x_hbm, y_ref, o_ref, buf, sem,
                      *, n_rows, rows_per_step, lanes, eps):
    t = pl.program_id(0)
    base = t * rows_per_step
    valid = jnp.minimum(rows_per_step, n_rows - base)     # rows in this step

    def _issue(r, carry):
        row = base + r
        tgt = y_smem[row]                                  # scalar SMEM read
        col = pl.multiple_of((tgt // lanes) * lanes, lanes)
        pltpu.make_async_copy(
            x_hbm.at[pl.ds(row, 1), pl.ds(col, lanes)],    # 512 B contiguous
            buf.at[pl.ds(r, 1)],
            sem.at[0],
        ).start()
        return carry

    jax.lax.fori_loop(0, valid, _issue, 0)

    def _wait(r, carry):
        # All copies share the semaphore and have identical size; the wait
        # descriptor only needs the shape (same trick as paged attention).
        pltpu.make_async_copy(
            x_hbm.at[pl.ds(0, 1), pl.ds(0, lanes)],
            buf.at[pl.ds(0, 1)],
            sem.at[0],
        ).wait()
        return carry

    jax.lax.fori_loop(0, valid, _wait, 0)

    # lanes is a power of two -> local column index is a cheap bitwise AND.
    y_local = jnp.bitwise_and(y_ref[...], lanes - 1)       # (R, 1)
    col_ids = jax.lax.broadcasted_iota(jnp.int32, (rows_per_step, lanes), 1)
    xblk = buf[...]
    picked = jnp.sum(
        jnp.where(col_ids == y_local, xblk, jnp.zeros_like(xblk)),
        axis=1, keepdims=True,
    ).astype(jnp.float32)
    # Rows past n_rows (partial last step) hold stale data but are discarded
    # by the masked partial output-block store.
    o_ref[...] = -jnp.log(picked + jnp.float32(eps))


def _ce_gather(x, y_flat, y_col, eps, rows_per_step):
    n, c = x.shape
    if n <= rows_per_step:
        rows = n
    else:
        rows = max(8, (rows_per_step // 8) * 8)
    grid = (pl.cdiv(n, rows),)
    kernel = functools.partial(
        _ce_gather_kernel, n_rows=n, rows_per_step=rows, lanes=_LANES, eps=eps)

    # TODO(synk): cross-step prefetch of the next row-group's DMAs (double
    # buffer) would hide per-group DMA latency at the cost of the parallel axis.
    return pl.pallas_call(
        kernel,
        out_shape=jax.ShapeDtypeStruct((n, 1), jnp.float32),
        grid_spec=pltpu.PrefetchScalarGridSpec(
            num_scalar_prefetch=1,                                  # y -> SMEM
            grid=grid,
            in_specs=[
                pl.BlockSpec(memory_space=pl.ANY),                  # x stays in HBM
                pl.BlockSpec((rows, 1), lambda t, y_sm: (t, 0)),    # y tile (vector math)
            ],
            out_specs=pl.BlockSpec((rows, 1), lambda t, y_sm: (t, 0)),
            scratch_shapes=[
                pltpu.VMEM((rows, _LANES), x.dtype),   # gathered slices
                pltpu.SemaphoreType.DMA((1,)),         # shared by all row DMAs
            ],
        ),
        compiler_params=pltpu.CompilerParams(
            dimension_semantics=("parallel",),
            vmem_limit_bytes=16 * 1024 * 1024,
        ),
        cost_estimate=pl.CostEstimate(
            flops=int(3 * n * _LANES),
            transcendentals=int(n),
            bytes_accessed=int(n * (_LANES * x.dtype.itemsize + 8) + 4 * n),
        ),
    )(y_flat, x, y_col)


# ---------------------------------------------------------------------------
# Public wrapper (matches CrossEntropyLoss.forward semantics).
# ---------------------------------------------------------------------------
def cross_entropy_loss(x, y, *, eps=_EPS_DEFAULT, block_bytes=8 * 1024 * 1024,
                       tile_n=None, tile_c=None,
                       gather_min_classes=8192, gather_rows_per_step=256):
    """x: (N, C) probabilities (f32 or bf16), y: (N,) int class indices.

    Returns the scalar f32 mean NLL of log(x + eps), matching
    nn.NLLLoss()((x + eps).log(), y).
    """
    n, c = x.shape
    y_flat = y.astype(jnp.int32)
    y_col = y_flat.reshape(n, 1)

    # TODO(synk): gather path for C % 128 != 0 (clamped, possibly unaligned
    # slice start) and for bf16 x (u32-pack rows for sublane-granular DMA);
    # those cases currently fall back to the streaming path.
    use_gather = (
        c >= gather_min_classes
        and c % _LANES == 0
        and x.dtype.itemsize == 4
        and tile_n is None and tile_c is None
    )
    if use_gather:
        per_row_nll = _ce_gather(x, y_flat, y_col, eps, gather_rows_per_step)
    else:
        per_row_nll = _ce_stream(x, y_col, eps, block_bytes, tile_n, tile_c)

    # Mean done in the wrapper: per-row partials keep the batch grid axis
    # parallel (v7x megacore) and avoid a long serial f32 accumulation.
    return jnp.sum(per_row_nll) / n


def _reference(x, y):
    picked = jnp.take_along_axis(
        x.astype(jnp.float32), y[:, None].astype(jnp.int32), axis=1)[:, 0]
    return jnp.mean(-jnp.log(picked + _EPS_DEFAULT))


if __name__ == "__main__":
    key = jax.random.PRNGKey(0)
    k1, k2, k3, k4, k5, k6 = jax.random.split(key, 6)

    # 1) Small single-tile streaming case (full-extent blocks).
    n1, c1 = 8, 32
    x1 = jax.nn.softmax(jax.random.normal(k1, (n1, c1), jnp.float32), axis=-1)
    y1 = jax.random.randint(k2, (n1,), 0, c1, dtype=jnp.int32)
    l1 = cross_entropy_loss(x1, y1)
    jax.block_until_ready(l1)
    r1 = _reference(x1, y1)
    assert jnp.allclose(l1, r1, rtol=1e-5, atol=1e-6), (l1, r1)

    # 2) Multi-tile streaming, bf16 input, partial trailing tiles on both axes
    #    (exercises masking, offset folding, native-dtype select).
    n2, c2 = 200, 160
    x2 = jax.nn.softmax(jax.random.normal(k3, (n2, c2), jnp.float32),
                        axis=-1).astype(jnp.bfloat16)
    y2 = jax.random.randint(k4, (n2,), 0, c2, dtype=jnp.int32)
    l2 = cross_entropy_loss(x2, y2, tile_n=128, tile_c=128)
    jax.block_until_ready(l2)
    r2 = _reference(x2, y2)
    assert jnp.allclose(l2, r2, rtol=1e-5, atol=1e-6), (l2, r2)

    # 3) Gather path (scalar-prefetched y, per-row DMA), partial last row group.
    n3, c3 = 200, 1024
    x3 = jax.nn.softmax(jax.random.normal(k5, (n3, c3), jnp.float32), axis=-1)
    y3 = jax.random.randint(k6, (n3,), 0, c3, dtype=jnp.int32)
    l3 = cross_entropy_loss(x3, y3, gather_min_classes=512,
                            gather_rows_per_step=64)
    jax.block_until_ready(l3)
    r3 = _reference(x3, y3)
    assert jnp.allclose(l3, r3, rtol=1e-5, atol=1e-6), (l3, r3)

    print("KERNEL_OK")
</pallas_src>

<mosaic_0001>
module attributes {stable_mosaic.version = 11 : i64} {
  func.func @_ce_stream_kernel(%arg0: i32, %arg1: i32, %arg2: memref<8x32xf32, #tpu.memory_space<vmem>>, %arg3: memref<8x1xi32, #tpu.memory_space<vmem>>, %arg4: memref<8x1xf32, #tpu.memory_space<vmem>>, %arg5: memref<8x1xf32, #tpu.memory_space<vmem>>) attributes {dimension_semantics = [#tpu.dimension_semantics<parallel>, #tpu.dimension_semantics<arbitrary>], iteration_bounds = array<i64: 1, 1>, scalar_prefetch = 0 : i64, scratch_operands = 1 : i64, tpu.core_type = #tpu.core_type<tc>, window_params = [{transform_indices = @transform_0, window_bounds = array<i64: 8, 32>}, {transform_indices = @transform_1, window_bounds = array<i64: 8, 1>}, {transform_indices = @transform_2, window_bounds = array<i64: 8, 1>}]} {
    %c0_i32 = arith.constant 0 : i32
    %0 = arith.cmpi eq, %arg1, %c0_i32 : i32
    %1 = arith.extui %0 : i1 to i32
    %c0_i32_0 = arith.constant 0 : i32
    %2 = arith.cmpi ne, %1, %c0_i32_0 : i32
    scf.if %2 {
      %cst_11 = arith.constant 0.000000e+00 : f32
      %21 = vector.broadcast %cst_11 : f32 to vector<8x1xf32>
      %c0_12 = arith.constant 0 : index
      %c0_13 = arith.constant 0 : index
      %22 = vector.load %arg5[%c0_12, %c0_13] : memref<8x1xf32, #tpu.memory_space<vmem>>, vector<8x1xf32>
      tpu.vector_store %arg5[%c0_12, %c0_13], %21 {strides = array<i32>} : memref<8x1xf32, #tpu.memory_space<vmem>>, vector<8x1xf32>,
    } else {
    }
    %c0 = arith.constant 0 : index
    %c0_1 = arith.constant 0 : index
    %3 = vector.load %arg2[%c0, %c0_1] : memref<8x32xf32, #tpu.memory_space<vmem>>, vector<8x32xf32>
    %c0_2 = arith.constant 0 : index
    %c0_3 = arith.constant 0 : index
    %4 = vector.load %arg3[%c0_2, %c0_3] : memref<8x1xi32, #tpu.memory_space<vmem>>, vector<8x1xi32>
    %c32_i32 = arith.constant 32 : i32
    %5 = arith.muli %arg1, %c32_i32 : i32
    %6 = vector.broadcast %5 : i32 to vector<8x1xi32>
    %7 = arith.subi %4, %6 : vector<8x1xi32>
    %8 = tpu.iota {dimensions = array<i32: 1>} : vector<8x32xi32>
    %9 = vector.broadcast %7 : vector<8x1xi32> to vector<8x32xi32>
    %10 = arith.cmpi eq, %8, %9 : vector<8x32xi32>
    %cst = arith.constant 0.000000e+00 : f32
    %11 = vector.broadcast %cst : f32 to vector<8x32xf32>
    %12 = arith.select %10, %3, %11 : vector<8x32xi1>, vector<8x32xf32>
    %cst_4 = arith.constant dense<0.000000e+00> : vector<8xf32>
    %13 = vector.multi_reduction <add>, %12, %cst_4 [1] : vector<8x32xf32> to vector<8xf32>
    %14 = vector.shape_cast %13 : vector<8xf32> to vector<8x1xf32>
    %c0_5 = arith.constant 0 : index
    %c0_6 = arith.constant 0 : index
    %15 = vector.load %arg5[%c0_5, %c0_6] : memref<8x1xf32, #tpu.memory_space<vmem>>, vector<8x1xf32>
    %16 = arith.addf %15, %14 : vector<8x1xf32>
    %c0_7 = arith.constant 0 : index
    %c0_8 = arith.constant 0 : index
    %17 = vector.load %arg5[%c0_7, %c0_8] : memref<8x1xf32, #tpu.memory_space<vmem>>, vector<8x1xf32>
    tpu.vector_store %arg5[%c0_7, %c0_8], %16 {strides = array<i32>} : memref<8x1xf32, #tpu.memory_space<vmem>>, vector<8x1xf32>,
    %c0_i32_9 = arith.constant 0 : i32
    %18 = arith.cmpi eq, %arg1, %c0_i32_9 : i32
    %19 = arith.extui %18 : i1 to i32
    %c0_i32_10 = arith.constant 0 : i32
    %20 = arith.cmpi ne, %19, %c0_i32_10 : i32
    scf.if %20 {
      %c0_11 = arith.constant 0 : index
      %c0_12 = arith.constant 0 : index
      %21 = vector.load %arg5[%c0_11, %c0_12] : memref<8x1xf32, #tpu.memory_space<vmem>>, vector<8x1xf32>
      %cst_13 = arith.constant 1.000000e-24 : f32
      %22 = vector.broadcast %cst_13 : f32 to vector<8x1xf32>
      %23 = arith.addf %21, %22 : vector<8x1xf32>
      %24 = math.log %23 : vector<8x1xf32>
      %cst_14 = arith.constant 0.000000e+00 : f32
      %25 = vector.broadcast %cst_14 : f32 to vector<8x1xf32>
      %26 = arith.subf %25, %24 : vector<8x1xf32>
      %c0_15 = arith.constant 0 : index
      %c0_16 = arith.constant 0 : index
      %27 = vector.load %arg4[%c0_15, %c0_16] : memref<8x1xf32, #tpu.memory_space<vmem>>, vector<8x1xf32>
      tpu.vector_store %arg4[%c0_15, %c0_16], %26 {strides = array<i32>} : memref<8x1xf32, #tpu.memory_space<vmem>>, vector<8x1xf32>,
    } else {
    }
    return
  }
  func.func @transform_0(%arg0: i32, %arg1: i32) -> (i32, i32) {
    %c0_i32 = arith.constant 0 : i32
    return %arg0, %arg1 : i32, i32
  }
  func.func @transform_1(%arg0: i32, %arg1: i32) -> (i32, i32) {
    %c0_i32 = arith.constant 0 : i32
    %c0_i32_0 = arith.constant 0 : i32
    return %arg0, %c0_i32 : i32, i32
  }
  func.func @transform_2(%arg0: i32, %arg1: i32) -> (i32, i32) {
    %c0_i32 = arith.constant 0 : i32
    %c0_i32_0 = arith.constant 0 : i32
    return %arg0, %c0_i32 : i32, i32
  }
}

</mosaic_0001>

<llo_original>
// kernel: tpu_custom_call.1
$region0: #{tpu_custom_call.1}
  #allocation0 [shape = 'u32[]', space=smem, size = 0x4, offset = 0x4, fixed_abs, tag = 'smem constant byte address 0x4 - core index']
  #allocation1 [shape = 'u32[144,128]{1,0:T(1,128)}', space=vmem, size = 0x12000, scoped, tag = 'internal scratch']
  #allocation2 [shape = 'f32[8,1]{1,0:T(8,128)}', space=vmem, size = 0x1000, scoped, tag = 'scratch operand']
  %s0 = inlined_call_operand.vmem [shape: f32[8,32], index: 0, kind: input, shape index: {}]
  %s1 = inlined_call_operand.vmem [shape: s32[8,1], index: 1, kind: input, shape index: {}]
  %s2 = inlined_call_operand.vmem [shape: f32[8,1], index: 2, kind: output, shape index: {}]
  %s3 = sld [smem:[#allocation0]]
  $region26: #{tpu_custom_call.1} parent=0
    _
  %s5 = ssub.s32 1, %s3
  %s6 = scalar_select 0, %s5, %s3
  // Predicated region
  $region2: #{tpu_custom_call.1} parent=0 // pred_check
    _
  $region3: #{tpu_custom_call.1} parent=0 // pred_check_branch
    %8 = sbr.rel (0) target = $region5
  $region4: #{tpu_custom_call.1} parent=0 // pred_region
    _
  $region5: #{tpu_custom_call.1} parent=0 // pred_fallthru
    _
  // Predicated region
  $region6: #{tpu_custom_call.1} parent=0 // pred_check
    _
  $region7: #{tpu_custom_call.1} parent=0 // pred_check_branch
    %10 = sbr.rel (0) target = $region9
  $region8: #{tpu_custom_call.1} parent=0 // pred_region
    _
  $region9: #{tpu_custom_call.1} parent=0 // pred_fallthru
    _
  %p11 = scmp.eq.s32.totalorder 0, 0
  // Predicated region
  $region10: #{tpu_custom_call.1} parent=0 // pred_check
    %p12 = pneg %p11
  $region11: #{tpu_custom_call.1} parent=0 // pred_check_branch
    %14 = sbr.rel (%p12) target = $region13
  $region12: #{tpu_custom_call.1} parent=0 // pred_region
    %vm15 = vcmask 7168
    %16 = vst.msk [vmem:[#allocation2] sm:$0xff] %vm15, 0.0
  $region13: #{tpu_custom_call.1} parent=0 // pred_fallthru
    _
  %v17 = vld [vmem:[%s0] sm:$0xff]
  %v18 = vld [vmem:[%s1] sm:$0xff]
  %s19 = smul.u32 0, 32
  %v20 = vstv %s19
  %v21 = vsub.s32 %v18, %v20
  %v22 = vlaneseq
  %v23 = vand.u32 %v22, 127
  %24 = vset.pattern.permute.xlu0 0
  %25 = vperm.xlu0 %24, %v21
  %v26 = vpop.permute.xlu0 %25
  %vm27 = vcmp.eq.s32.totalorder %v23, %v26
  %v28 = vsel %vm27, %v17, 0.0
  %vm29 = vcmask 261120
  %v30 = vsel %vm29, %v28, 0.0
  %31 = vadd.xlane.f32.xlu0 %v30
  %v32 = vpop.xlane.xlu0 %31
  %v33 = vld [vmem:[#allocation2] sm:$0xff]
  %v34 = vadd.f32 %v33, %v32
  %vm35 = vcmask 7168
  %36 = vst.msk [vmem:[#allocation2] sm:$0xff] %vm35, %v34
  // Predicated region
  $region14: #{tpu_custom_call.1} parent=0 // pred_check
    %p37 = pneg %p11
  $region15: #{tpu_custom_call.1} parent=0 // pred_check_branch
    %39 = sbr.rel (%p37) target = $region17
  $region16: #{tpu_custom_call.1} parent=0 // pred_region
    %v40 = vld [vmem:[#allocation2] sm:$0xff]
    %v41 = vadd.f32 %v40, 1e-24
    %v42 = vlog2.pop %v41
    %v43 = vmul.f32 %v42, 0.6931472
    %v44 = vsub.f32 0.0, %v43
    %45 = vst.msk [vmem:[%s2] sm:$0xff] %vm35, %v44
  $region17: #{tpu_custom_call.1} parent=0 // pred_fallthru
    _
  // Predicated region
  $region18: #{tpu_custom_call.1} parent=0 // pred_check
    _
  $region19: #{tpu_custom_call.1} parent=0 // pred_check_branch
    %47 = sbr.rel (0) target = $region21
  $region20: #{tpu_custom_call.1} parent=0 // pred_region
    _
  $region21: #{tpu_custom_call.1} parent=0 // pred_fallthru
    _
  // Predicated region
  $region22: #{tpu_custom_call.1} parent=0 // pred_check
    _
  $region23: #{tpu_custom_call.1} parent=0 // pred_check_branch
    %49 = sbr.rel (0) target = $region25
  $region24: #{tpu_custom_call.1} parent=0 // pred_region
    _
  $region25: #{tpu_custom_call.1} parent=0 // pred_fallthru
    _

</llo_original>
